<compile_context>
chip_gen: v7x
topology: tpu7x:2x2x1
jax: 0.10.0
libtpu: 0.0.40
codegen_flags: <defaults>
</compile_context>

<pallas_src>
import jax
import jax.numpy as jnp
from jax.experimental import pallas as pl
from jax.experimental.pallas import tpu as pltpu

_LANES = 128
_MAX_TILE_ROWS = 1024  # (1024, 128) f32 = 512 KiB per block; x2 buffers ~1 MiB


def _round_up(x: int, m: int) -> int:
    return ((x + m - 1) // m) * m


def _uniform_rand_kernel(seed_ref, out_ref):
    """Fill out_ref with uniform [0, 1) float32 noise.

    seed_ref : SMEM int32[1]              (scalar-prefetched seed)
    out_ref  : VMEM float32[tile_rows, 128]  (lane-dense output tile)
    """
    tile_rows, lanes = out_ref.shape
    tile_id = pl.program_id(0)

    # Global flat element index of every lane in this tile (counter).
    row = jax.lax.broadcasted_iota(jnp.uint32, (tile_rows, lanes), 0)
    lane = jax.lax.broadcasted_iota(jnp.uint32, (tile_rows, lanes), 1)
    base = (tile_id * (tile_rows * lanes)).astype(jnp.uint32)
    idx = base + row * jnp.uint32(lanes) + lane

    # Mix the counter with the seed (golden-ratio stir), then murmur3 fmix32.
    x = idx ^ (seed_ref[0].astype(jnp.uint32) * jnp.uint32(0x9E3779B9))
    x = x ^ (x >> 16)
    x = x * jnp.uint32(0x85EBCA6B)
    x = x ^ (x >> 13)
    x = x * jnp.uint32(0xC2B2AE35)
    x = x ^ (x >> 16)

    # Top 23 bits -> float in [0, 1).  (int path avoids uint->f32 converts.)
    mant = (x >> 9).astype(jnp.int32)
    out_ref[...] = mant.astype(jnp.float32) * jnp.float32(1.0 / 8388608.0)


def _pallas_uniform(total: int, seed: int) -> jax.Array:
    """Uniform [0,1) float32 of length >= total, lane-dense (rows, 128)."""
    rows = max(1, -(-total // _LANES))            # ceil(total / 128)
    tile_rows = min(_MAX_TILE_ROWS, _round_up(rows, 8))
    padded_rows = _round_up(rows, tile_rows)
    grid = (padded_rows // tile_rows,)

    seed_arr = jnp.asarray([seed], dtype=jnp.int32)

    out = pl.pallas_call(
        _uniform_rand_kernel,
        out_shape=jax.ShapeDtypeStruct((padded_rows, _LANES), jnp.float32),
        grid_spec=pltpu.PrefetchScalarGridSpec(
            num_scalar_prefetch=1,
            grid=grid,
            in_specs=[],
            out_specs=pl.BlockSpec((tile_rows, _LANES),
                                   lambda i, seed_ref: (i, 0)),
        ),
        compiler_params=pltpu.CompilerParams(
            dimension_semantics=("parallel",),
            vmem_limit_bytes=32 * 1024 * 1024,
        ),
    )(seed_arr)
    return out


class DummyModelPallas:
    """JAX/Pallas port of tests/mocks.py::DummyModel."""

    def __init__(self, key: jax.Array):
        # torch.nn.Parameter(torch.randn(1)) — unused in the forward pass,
        # kept only for parameter-shape fidelity.
        self.dummy_param = jax.random.normal(key, (1,), dtype=jnp.float32)

    def __call__(self, x: jax.Array, seed: int = 0) -> jax.Array:
        # TODO(synk): torch.rand draws fresh noise each call; here the caller
        # must advance `seed` between calls to get independent outputs.
        if x.ndim == 3:
            x = x[None]  # mirrors torch's unsqueeze(0) branch
        B, T, C, H, W = x.shape  # contents ignored, only shape used
        total = B * H * W
        flat = _pallas_uniform(total, seed)
        return flat.reshape(-1)[:total].reshape(B, 1, H, W)


if __name__ == "__main__":
    key = jax.random.PRNGKey(0)
    k_param, k_x = jax.random.split(key)

    model = DummyModelPallas(k_param)

    # Small 5-D input consistent with the (B, T, C, H, W) unpack in forward.
    x = jax.random.normal(k_x, (2, 3, 4, 16, 16), dtype=jnp.float32)

    out = model(x, seed=0)
    out = jax.block_until_ready(out)

    assert out.shape == (2, 1, 16, 16), out.shape
    assert out.dtype == jnp.float32, out.dtype
    assert bool(jnp.all(out >= 0.0)) and bool(jnp.all(out < 1.0))

    # Different seeds give different noise; same seed is deterministic.
    out2 = jax.block_until_ready(model(x, seed=1))
    assert not bool(jnp.allclose(out, out2))

    print("KERNEL_OK")
</pallas_src>

<mosaic_0001>
module attributes {stable_mosaic.version = 11 : i64} {
  func.func @_uniform_rand_kernel(%arg0: i32, %arg1: memref<1xi32, #tpu.memory_space<smem>>, %arg2: memref<8x128xf32, #tpu.memory_space<vmem>>) attributes {dimension_semantics = [#tpu.dimension_semantics<parallel>], iteration_bounds = array<i64: 1>, scalar_prefetch = 1 : i64, scratch_operands = 0 : i64, tpu.core_type = #tpu.core_type<tc>, window_params = [{transform_indices = @transform_0, window_bounds = array<i64: 8, 128>}]} {
    %0 = tpu.iota {dimensions = array<i32: 0>} : vector<8x128xi32>
    %1 = tpu.iota {dimensions = array<i32: 1>} : vector<8x128xi32>
    %c1024_i32 = arith.constant 1024 : i32
    %2 = arith.muli %arg0, %c1024_i32 : i32
    %c128_i32 = arith.constant 128 : i32
    %3 = vector.broadcast %c128_i32 : i32 to vector<8x128xi32>
    %4 = arith.muli %0, %3 : vector<8x128xi32>
    %5 = vector.broadcast %2 : i32 to vector<8x128xi32>
    %6 = arith.addi %5, %4 : vector<8x128xi32>
    %7 = arith.addi %6, %1 : vector<8x128xi32>
    %c0 = arith.constant 0 : index
    %8 = memref.load %arg1[%c0] : memref<1xi32, #tpu.memory_space<smem>>
    %c-1640531527_i32 = arith.constant -1640531527 : i32
    %9 = arith.muli %8, %c-1640531527_i32 : i32
    %10 = vector.broadcast %9 : i32 to vector<8x128xi32>
    %11 = arith.xori %7, %10 : vector<8x128xi32>
    %c16_i32 = arith.constant 16 : i32
    %12 = vector.broadcast %c16_i32 : i32 to vector<8x128xi32>
    %13 = arith.shrui %11, %12 : vector<8x128xi32>
    %14 = arith.xori %11, %13 : vector<8x128xi32>
    %c-2048144789_i32 = arith.constant -2048144789 : i32
    %15 = vector.broadcast %c-2048144789_i32 : i32 to vector<8x128xi32>
    %16 = arith.muli %14, %15 : vector<8x128xi32>
    %c13_i32 = arith.constant 13 : i32
    %17 = vector.broadcast %c13_i32 : i32 to vector<8x128xi32>
    %18 = arith.shrui %16, %17 : vector<8x128xi32>
    %19 = arith.xori %16, %18 : vector<8x128xi32>
    %c-1028477387_i32 = arith.constant -1028477387 : i32
    %20 = vector.broadcast %c-1028477387_i32 : i32 to vector<8x128xi32>
    %21 = arith.muli %19, %20 : vector<8x128xi32>
    %c16_i32_0 = arith.constant 16 : i32
    %22 = vector.broadcast %c16_i32_0 : i32 to vector<8x128xi32>
    %23 = arith.shrui %21, %22 : vector<8x128xi32>
    %24 = arith.xori %21, %23 : vector<8x128xi32>
    %c9_i32 = arith.constant 9 : i32
    %25 = vector.broadcast %c9_i32 : i32 to vector<8x128xi32>
    %26 = arith.shrui %24, %25 : vector<8x128xi32>
    %27 = arith.sitofp %26 : vector<8x128xi32> to vector<8x128xf32>
    %cst = arith.constant 1.1920929E-7 : f32
    %28 = vector.broadcast %cst : f32 to vector<8x128xf32>
    %29 = arith.mulf %27, %28 : vector<8x128xf32>
    %c0_1 = arith.constant 0 : index
    %c0_2 = arith.constant 0 : index
    %30 = vector.load %arg2[%c0_1, %c0_2] : memref<8x128xf32, #tpu.memory_space<vmem>>, vector<8x128xf32>
    tpu.vector_store %arg2[%c0_1, %c0_2], %29 {strides = array<i32>} : memref<8x128xf32, #tpu.memory_space<vmem>>, vector<8x128xf32>,
    return
  }
  func.func @transform_0(%arg0: i32, %arg1: memref<1xi32, #tpu.memory_space<smem>>) -> (i32, i32) {
    %c0_i32 = arith.constant 0 : i32
    %c0_i32_0 = arith.constant 0 : i32
    return %arg0, %c0_i32 : i32, i32
  }
}

</mosaic_0001>

<llo_original>
// kernel: tpu_custom_call.1
$region0: #{tpu_custom_call.1}
  #allocation0 [shape = 'u32[]', space=smem, size = 0x4, offset = 0x4, fixed_abs, tag = 'smem constant byte address 0x4 - core index']
  #allocation1 [shape = 'u32[144,128]{1,0:T(1,128)}', space=vmem, size = 0x12000, scoped, tag = 'internal scratch']
  #allocation2 [shape = 's32[1]{0}', space=sflag, size = 0x4, scoped, tag = 'scoped memory for tpu_custom_call.1']
  #allocation3 [shape = 's32[1]{0:T(128)S(6)}', space=smem, size = 0x200, scoped, tag = 'prefetched SMEM operand 0']
  %s0 = inlined_call_operand.<no memory space> [shape: s32[1], index: 0, kind: input, shape index: {}]
  %s1 = inlined_call_operand.hbm [shape: f32[8,128], index: 1, kind: output, shape index: {}]
  %s2 = sld [smem:[#allocation0]]
  $region10: #{tpu_custom_call.1} parent=0
    _
  %s4 = ssub.s32 1, %s2
  %s5 = scalar_select 0, %s4, %s2
  %6 = sst [smem:[#allocation3]] %s0
  $region1: #{tpu_custom_call.1} parent=0
    #allocation4 [shape = 'u8[4096]{0}', space=vmem, size = 0x1000, scoped, tag = 'output window, operand 0, single buffered']
    #allocation5 [shape = 's32[1]{0}', space=sflag, size = 0x4, scoped, tag = 'scoped memory for tpu_custom_call.1']
    %7 = vsyncpa [#allocation5], 0
    %v8 = vlaneseq
    %v9 = vshrl.u32 %v8, 7
    %v10 = vlaneseq
    %v11 = vand.u32 %v10, 127
    %s12 = smul.u32 0, 1024
    %v13 = vmul.u32 %v9, 128
    %v14 = vstv %s12
    %v15 = vadd.s32 %v14, %v13
    %v16 = vadd.s32 %v15, %v11
    %s17 = sld [smem:[#allocation3]]
    %s18 = smul.u32 %s17, 2654435769
    %v19 = vstv %s18
    %v20 = vxor.u32 %v16, %v19
    %v21 = vshrl.u32 %v20, 16
    %v22 = vxor.u32 %v20, %v21
    %v23 = vmul.u32 %v22, 2246822507
    %v24 = vshrl.u32 %v23, 13
    %v25 = vxor.u32 %v23, %v24
    %v26 = vmul.u32 %v25, 3266489909
    %v27 = vshrl.u32 %v26, 16
    %v28 = vxor.u32 %v26, %v27
    %v29 = vshrl.u32 %v28, 9
    %v30 = vcvt.s32.f32 %v29
    %v31 = vmul.f32 %v30, 1.1920929e-07
    %32 = vst [vmem:[#allocation4] sm:$0xff] %v31
    // Predicated region
    $region2: #{tpu_custom_call.1} parent=1 // pred_check
      _
    $region3: #{tpu_custom_call.1} parent=1 // pred_check_branch
      %34 = sbr.rel (0) target = $region5
    $region4: #{tpu_custom_call.1} parent=1 // pred_region
      %s36 = ssub.s32 128, 128
      %37 = vsyncadd [#allocation5], %s36
      %s39 = sshll.u32 [#allocation4], 4
      %s40 = int_to_ptr.vmem [resolvable:$true] %s39
      %42 = dma.vmem_to_hbm [thread:$0]  %s40, 128, %s1, [#allocation5]
    $region5: #{tpu_custom_call.1} parent=1 // pred_fallthru
      _
    // Predicated region
    $region6: #{tpu_custom_call.1} parent=1 // pred_check
      _
    $region7: #{tpu_custom_call.1} parent=1 // pred_check_branch
      %44 = sbr.rel (0) target = $region9
    $region8: #{tpu_custom_call.1} parent=1 // pred_region
      %45 = dma.done [#allocation5], 128
    $region9: #{tpu_custom_call.1} parent=1 // pred_fallthru
      _
    %46 = vsyncpa [#allocation5], 1

</llo_original>
